<compile_context>
chip_gen: v7x
topology: tpu7x:2x2x1
jax: 0.10.0
libtpu: 0.0.40
codegen_flags: <defaults>
</compile_context>

<pallas_src>
import functools

import jax
import jax.numpy as jnp
from jax.experimental import pallas as pl
from jax.experimental.pallas import tpu as pltpu


def _round_up(x, m):
    return (x + m - 1) // m * m


def _vmem_capacity_bytes():
    try:
        return int(pltpu.get_tpu_info().vmem_capacity_bytes)
    except Exception:
        return 64 * 1024 * 1024  # conservative (v7x per-core VMEM)


# ----------------------------------------------------------------------------
# Shared per-(layer, row-tile) compute.
#   a_rows : (tm, n_pad) bf16 tile of A_hat (VMEM)
#   act_ref: (2, n_pad, f_pad) bf16 ping-pong activations (VMEM scratch)
# ----------------------------------------------------------------------------
def _layer_tile(a_rows, w_ref, b_ref, o_ref, act_ref, *, tm, num_layers):
    l = pl.program_id(0)          # layer index (outer, strictly sequential)
    i = pl.program_id(1)          # node-row tile (inner)

    src = l % 2                   # activations read for this layer
    row0 = pl.multiple_of(i * tm, tm)

    # (A_hat[rows,:] @ X_l) @ W_l + b_l : bf16 operands on the MXU, f32 accum.
    t = jnp.dot(a_rows, act_ref[src], preferred_element_type=jnp.float32)
    out = jnp.dot(t.astype(jnp.bfloat16), w_ref[0],
                  preferred_element_type=jnp.float32) + b_ref[0]

    is_last = l == num_layers - 1

    @pl.when(jnp.logical_not(is_last))
    def _():
        # ReLU (dropout p=0 is the identity) then store next-layer activations
        # into the other ping-pong buffer.
        h = jnp.maximum(out, 0.0).astype(act_ref.dtype)
        dst_is_one = (src == 0)

        @pl.when(dst_is_one)
        def _():
            act_ref[1, pl.ds(row0, tm), :] = h

        @pl.when(jnp.logical_not(dst_is_one))
        def _():
            act_ref[0, pl.ds(row0, tm), :] = h

    @pl.when(is_last)
    def _():
        # Only the last layer produces an HBM writeback (the output index_map
        # is degenerate for l < num_layers - 1).
        o_ref[...] = out.astype(o_ref.dtype)


# ----------------------------------------------------------------------------
# Kernel variant 1: A_hat fully resident in VMEM (fetched once).
# ----------------------------------------------------------------------------
def _gcn_kernel_resident(x_hbm, a_hbm, w_ref, b_ref, o_ref, a_vmem, act_ref,
                         *, tm, num_layers):
    l = pl.program_id(0)
    i = pl.program_id(1)

    @pl.when((l == 0) & (i == 0))
    def _():
        pltpu.sync_copy(a_hbm, a_vmem)          # A_hat resident for all layers
        pltpu.sync_copy(x_hbm, act_ref.at[0])   # seed activations with features

    row0 = pl.multiple_of(i * tm, tm)
    _layer_tile(a_vmem[pl.ds(row0, tm), :], w_ref, b_ref, o_ref, act_ref,
                tm=tm, num_layers=num_layers)


# ----------------------------------------------------------------------------
# Kernel variant 2: A_hat streamed as double-buffered row tiles (large graphs).
# ----------------------------------------------------------------------------
def _gcn_kernel_streaming(x_hbm, a_ref, w_ref, b_ref, o_ref, act_ref,
                          *, tm, num_layers):
    l = pl.program_id(0)
    i = pl.program_id(1)

    @pl.when((l == 0) & (i == 0))
    def _():
        pltpu.sync_copy(x_hbm, act_ref.at[0])   # seed activations with features

    _layer_tile(a_ref[...], w_ref, b_ref, o_ref, act_ref,
                tm=tm, num_layers=num_layers)


# ----------------------------------------------------------------------------
# One-time padding / casting (hoisted out of the forward path).
# ----------------------------------------------------------------------------
def prepare_gcn_inputs(a_hat, features, weights, biases, *, row_tile=512):
    n = features.shape[0]
    num_layers = len(weights)

    f_dims = [features.shape[1]] + [w.shape[1] for w in weights]
    f_pad = _round_up(max(max(f_dims), 128), 128)
    # TODO(synk): on v6e/v7x (256-wide MXU), dims in 129..256 could pad to 256.

    n_pad = _round_up(n, 128)
    tm = 128
    for cand in range(min(row_tile, n_pad), 127, -128):
        if n_pad % cand == 0:
            tm = cand
            break

    a_p = jnp.zeros((n_pad, n_pad), jnp.bfloat16).at[:n, :n].set(
        a_hat.astype(jnp.bfloat16))
    x_p = jnp.zeros((n_pad, f_pad), jnp.bfloat16).at[:n, :features.shape[1]].set(
        features.astype(jnp.bfloat16))
    w_stack = jnp.zeros((num_layers, f_pad, f_pad), jnp.bfloat16)
    b_stack = jnp.zeros((num_layers, 1, f_pad), jnp.float32)
    for li, (w, b) in enumerate(zip(weights, biases)):
        w_stack = w_stack.at[li, :w.shape[0], :w.shape[1]].set(
            w.astype(jnp.bfloat16))
        b_stack = b_stack.at[li, 0, :b.shape[0]].set(b.astype(jnp.float32))

    meta = dict(n=n, n_pad=n_pad, f_pad=f_pad, tm=tm, num_layers=num_layers,
                f_out=weights[-1].shape[1])
    return (x_p, a_p, w_stack, b_stack), meta


# ----------------------------------------------------------------------------
# Forward: build the fused pallas_call and slice the result.
# ----------------------------------------------------------------------------
def gcn_forward_prepared(x_p, a_p, w_stack, b_stack, meta, *,
                         force_streaming=False):
    n, n_pad, f_pad = meta["n"], meta["n_pad"], meta["f_pad"]
    tm, num_layers = meta["tm"], meta["num_layers"]

    cap = _vmem_capacity_bytes()
    budget = int(cap * 0.8)

    def vmem_usage(tm_, resident):
        u = (2 * n_pad * f_pad * 2        # ping-pong activations (bf16)
             + 2 * f_pad * f_pad * 2      # W_l double buffer (bf16)
             + 2 * f_pad * 4              # b_l double buffer (f32)
             + 2 * tm_ * f_pad * 4)       # output tile double buffer (f32)
        u += n_pad * n_pad * 2 if resident else 2 * tm_ * n_pad * 2
        return u

    use_resident = (not force_streaming) and vmem_usage(tm, True) <= budget
    if not use_resident:
        while tm > 128 and vmem_usage(tm, False) > budget:
            tm -= 128
            while n_pad % tm:
                tm -= 128
    n_tiles = n_pad // tm
    grid = (num_layers, n_tiles)

    vmem_limit = int(min(cap, max(vmem_usage(tm, use_resident) + (16 << 20),
                                  32 << 20)))

    flops = num_layers * (2 * n_pad * n_pad * f_pad + 2 * n_pad * f_pad * f_pad)
    a_bytes = a_p.size * 2 if use_resident else num_layers * a_p.size * 2
    bytes_accessed = (a_bytes + x_p.size * 2 + w_stack.size * 2
                      + b_stack.size * 4 + n_pad * f_pad * 4)

    # Only the last layer's row tiles map to distinct output blocks; earlier
    # layers stay on block (0, 0) so no intermediate HBM writebacks happen.
    out_index_map = lambda l, i: (jnp.where(l == num_layers - 1, i, 0), 0)

    w_spec = pl.BlockSpec((1, f_pad, f_pad), lambda l, i: (l, 0, 0))
    b_spec = pl.BlockSpec((1, 1, f_pad), lambda l, i: (l, 0, 0))

    common = dict(
        out_shape=jax.ShapeDtypeStruct((n_pad, f_pad), jnp.float32),
        grid=grid,
        out_specs=pl.BlockSpec((tm, f_pad), out_index_map),
        compiler_params=pltpu.CompilerParams(
            # Layer axis carries the activation dependency; row axis must
            # complete per layer before the next layer reads the activations,
            # so both are "arbitrary".
            # TODO(synk): split the row axis over v7x's two TensorCores.
            dimension_semantics=("arbitrary", "arbitrary"),
            vmem_limit_bytes=vmem_limit),
        cost_estimate=pl.CostEstimate(flops=int(flops), transcendentals=0,
                                      bytes_accessed=int(bytes_accessed)),
    )

    if use_resident:
        out = pl.pallas_call(
            functools.partial(_gcn_kernel_resident, tm=tm,
                              num_layers=num_layers),
            in_specs=[pl.BlockSpec(memory_space=pl.ANY),   # features (read once)
                      pl.BlockSpec(memory_space=pl.ANY),   # A_hat (VMEM-resident)
                      w_spec, b_spec],
            scratch_shapes=[pltpu.VMEM((n_pad, n_pad), jnp.bfloat16),
                            pltpu.VMEM((2, n_pad, f_pad), jnp.bfloat16)],
            **common,
        )(x_p, a_p, w_stack, b_stack)
    else:
        out = pl.pallas_call(
            functools.partial(_gcn_kernel_streaming, tm=tm,
                              num_layers=num_layers),
            in_specs=[pl.BlockSpec(memory_space=pl.ANY),             # features
                      pl.BlockSpec((tm, n_pad), lambda l, i: (i, 0)),  # A rows
                      w_spec, b_spec],
            scratch_shapes=[pltpu.VMEM((2, n_pad, f_pad), jnp.bfloat16)],
            **common,
        )(x_p, a_p, w_stack, b_stack)

    return out[:n, :meta["f_out"]]


def gcn_forward_pallas(a_hat, features, weights, biases, *, row_tile=512,
                       force_streaming=False):
    prepared, meta = prepare_gcn_inputs(a_hat, features, weights, biases,
                                        row_tile=row_tile)
    return gcn_forward_prepared(*prepared, meta, force_streaming=force_streaming)


# ----------------------------------------------------------------------------
# Reference (plain JAX) mirroring the kernel's bf16-operand / f32-accum math
# and its (A @ X) @ W association.
# ----------------------------------------------------------------------------
def gcn_reference(a_hat, features, weights, biases):
    a_bf = a_hat.astype(jnp.bfloat16)
    x_bf = features.astype(jnp.bfloat16)
    num_layers = len(weights)
    out = None
    for li, (w, b) in enumerate(zip(weights, biases)):
        ax = jnp.dot(a_bf, x_bf,
                     preferred_element_type=jnp.float32).astype(jnp.bfloat16)
        out = jnp.dot(ax, w.astype(jnp.bfloat16),
                      preferred_element_type=jnp.float32) + b
        if li != num_layers - 1:
            out = jnp.maximum(out, 0.0)
        x_bf = out.astype(jnp.bfloat16)
    return out


# ----------------------------------------------------------------------------
# Parameter / graph construction (deterministic, in-script)
# ----------------------------------------------------------------------------
def init_params(key, in_feats, hidden_feats, out_feats, num_layers):
    dims = [in_feats] + [hidden_feats] * (num_layers - 1) + [out_feats]
    weights, biases = [], []
    for i in range(num_layers):
        key, wk, bk = jax.random.split(key, 3)
        fan_in, fan_out = dims[i], dims[i + 1]
        limit = (6.0 / (fan_in + fan_out)) ** 0.5  # Xavier uniform (DGL default)
        w = jax.random.uniform(wk, (fan_in, fan_out), jnp.float32, -limit, limit)
        b = 0.05 * jax.random.normal(bk, (fan_out,), jnp.float32)
        weights.append(w)
        biases.append(b)
    return weights, biases


def make_normalized_adjacency(key, n_nodes, edge_prob=0.3):
    bern = jax.random.bernoulli(key, edge_prob, (n_nodes, n_nodes)).astype(jnp.float32)
    a = jnp.maximum(bern, bern.T)
    a = jnp.maximum(a, jnp.eye(n_nodes, dtype=jnp.float32))  # degree >= 1
    deg = jnp.sum(a, axis=1)
    d_inv_sqrt = 1.0 / jnp.sqrt(deg)
    return a * d_inv_sqrt[:, None] * d_inv_sqrt[None, :]


if __name__ == "__main__":
    key = jax.random.PRNGKey(0)
    k_graph, k_feat, k_param = jax.random.split(key, 3)

    n_nodes = 64
    in_feats, hidden_feats, out_feats = 16, 32, 8
    num_layers = 3

    a_hat = make_normalized_adjacency(k_graph, n_nodes)
    features = jax.random.normal(k_feat, (n_nodes, in_feats), jnp.float32)
    weights, biases = init_params(k_param, in_feats, hidden_feats, out_feats,
                                  num_layers)

    # Padding / casting hoisted: done once, reused by both forward calls.
    prepared, meta = prepare_gcn_inputs(a_hat, features, weights, biases)

    ref = gcn_reference(a_hat, features, weights, biases)

    out_resident = jax.block_until_ready(gcn_forward_prepared(*prepared, meta))
    out_streaming = jax.block_until_ready(
        gcn_forward_prepared(*prepared, meta, force_streaming=True))

    assert out_resident.shape == (n_nodes, out_feats)
    assert out_streaming.shape == (n_nodes, out_feats)
    for name, out in (("resident", out_resident), ("streaming", out_streaming)):
        max_err = float(jnp.max(jnp.abs(out - ref)))
        assert jnp.allclose(out, ref, atol=2e-3, rtol=2e-3), \
            f"{name}: max |err| = {max_err}"

    print("KERNEL_OK")
</pallas_src>

<mosaic_0001>
module attributes {stable_mosaic.version = 11 : i64} {
  func.func @_gcn_kernel_resident(%arg0: i32, %arg1: i32, %arg2: memref<128x128xbf16, #tpu.memory_space<any>>, %arg3: memref<128x128xbf16, #tpu.memory_space<any>>, %arg4: memref<1x128x128xbf16, #tpu.memory_space<vmem>>, %arg5: memref<1x1x128xf32, #tpu.memory_space<vmem>>, %arg6: memref<128x128xf32, #tpu.memory_space<vmem>>, %arg7: memref<128x128xbf16, #tpu.memory_space<vmem>>, %arg8: memref<2x128x128xbf16, #tpu.memory_space<vmem>>) attributes {dimension_semantics = [#tpu.dimension_semantics<arbitrary>, #tpu.dimension_semantics<arbitrary>], iteration_bounds = array<i64: 3, 1>, scalar_prefetch = 0 : i64, scratch_operands = 2 : i64, tpu.core_type = #tpu.core_type<tc>, window_params = [{}, {}, {transform_indices = @transform_2, window_bounds = array<i64: 1, 128, 128>}, {transform_indices = @transform_3, window_bounds = array<i64: 1, 1, 128>}, {transform_indices = @transform_4, window_bounds = array<i64: 128, 128>}]} {
    %c0_i32 = arith.constant 0 : i32
    %0 = arith.cmpi eq, %arg0, %c0_i32 : i32
    %c0_i32_0 = arith.constant 0 : i32
    %1 = arith.cmpi eq, %arg1, %c0_i32_0 : i32
    %2 = arith.andi %0, %1 : i1
    %3 = arith.extui %2 : i1 to i32
    %c0_i32_1 = arith.constant 0 : i32
    %4 = arith.cmpi ne, %3, %c0_i32_1 : i32
    scf.if %4 {
      "tpu.region"() ({
        %39 = tpu.sem_alloc : memref<!tpu.dma_semaphore, #tpu.memory_space<semaphore_mem>>
        tpu.enqueue_dma source(%arg3 : memref<128x128xbf16, #tpu.memory_space<any>>) target(%arg7 : memref<128x128xbf16, #tpu.memory_space<vmem>>) target_semaphore(%39 : memref<!tpu.dma_semaphore, #tpu.memory_space<semaphore_mem>>)
        tpu.wait_dma2 semaphore(%39 : memref<!tpu.dma_semaphore, #tpu.memory_space<semaphore_mem>>) src(%arg3 : memref<128x128xbf16, #tpu.memory_space<any>>) dst(%arg7 : memref<128x128xbf16, #tpu.memory_space<vmem>>)
        tpu.yield
      }) : () -> ()
      %c0_i32_19 = arith.constant 0 : i32
      "tpu.region"() ({
        %39 = tpu.sem_alloc : memref<!tpu.dma_semaphore, #tpu.memory_space<semaphore_mem>>
        %c0_i32_20 = arith.constant 0 : i32
        %c0_i32_21 = arith.constant 0 : i32
        %40 = tpu.memref_slice %arg8[%c0_i32_19, %c0_i32_20, %c0_i32_21] : memref<2x128x128xbf16, #tpu.memory_space<vmem>> -> memref<1x128x128xbf16, #tpu.memory_space<vmem>>
        %41 = tpu.memref_squeeze %40 : memref<1x128x128xbf16, #tpu.memory_space<vmem>> -> memref<128x128xbf16, #tpu.memory_space<vmem>>
        tpu.enqueue_dma source(%arg2 : memref<128x128xbf16, #tpu.memory_space<any>>) target(%41 : memref<128x128xbf16, #tpu.memory_space<vmem>>) target_semaphore(%39 : memref<!tpu.dma_semaphore, #tpu.memory_space<semaphore_mem>>)
        %c0_i32_22 = arith.constant 0 : i32
        %c0_i32_23 = arith.constant 0 : i32
        %42 = tpu.memref_slice %arg8[%c0_i32_19, %c0_i32_22, %c0_i32_23] : memref<2x128x128xbf16, #tpu.memory_space<vmem>> -> memref<1x128x128xbf16, #tpu.memory_space<vmem>>
        %43 = tpu.memref_squeeze %42 : memref<1x128x128xbf16, #tpu.memory_space<vmem>> -> memref<128x128xbf16, #tpu.memory_space<vmem>>
        tpu.wait_dma2 semaphore(%39 : memref<!tpu.dma_semaphore, #tpu.memory_space<semaphore_mem>>) src(%arg2 : memref<128x128xbf16, #tpu.memory_space<any>>) dst(%43 : memref<128x128xbf16, #tpu.memory_space<vmem>>)
        tpu.yield
      }) : () -> ()
    } else {
    }
    %c128_i32 = arith.constant 128 : i32
    %5 = arith.muli %arg1, %c128_i32 : i32
    %6 = tpu.assume_multiple %5, 128 : i32
    %7 = arith.index_cast %6 : i32 to index
    %c0 = arith.constant 0 : index
    %8 = vector.load %arg7[%7, %c0] : memref<128x128xbf16, #tpu.memory_space<vmem>>, vector<128x128xbf16>
    %c2_i32 = arith.constant 2 : i32
    %c0_i32_2 = arith.constant 0 : i32
    %9 = arith.cmpi eq, %c2_i32, %c0_i32_2 : i32
    %c1_i32 = arith.constant 1 : i32
    %10 = arith.select %9, %c1_i32, %c2_i32 : i32
    %11 = arith.remsi %arg0, %10 : i32
    %c0_i32_3 = arith.constant 0 : i32
    %12 = arith.cmpi ne, %11, %c0_i32_3 : i32
    %c0_i32_4 = arith.constant 0 : i32
    %13 = arith.cmpi slt, %11, %c0_i32_4 : i32
    %c0_i32_5 = arith.constant 0 : i32
    %14 = arith.cmpi slt, %10, %c0_i32_5 : i32
    %15 = arith.xori %13, %14 : i1
    %16 = arith.andi %15, %12 : i1
    %17 = arith.addi %11, %10 : i32
    %18 = arith.select %16, %17, %11 : i32
    %c128_i32_6 = arith.constant 128 : i32
    %19 = arith.muli %arg1, %c128_i32_6 : i32
    %20 = tpu.assume_multiple %19, 128 : i32
    %21 = arith.index_cast %18 : i32 to index
    %c0_7 = arith.constant 0 : index
    %c0_8 = arith.constant 0 : index
    %22 = vector.load %arg8[%21, %c0_7, %c0_8] : memref<2x128x128xbf16, #tpu.memory_space<vmem>>, vector<1x128x128xbf16>
    %23 = vector.shape_cast %22 : vector<1x128x128xbf16> to vector<128x128xbf16>
    %cst = arith.constant dense<0.000000e+00> : vector<128x128xf32>
    %24 = tpu.matmul %8, %23, %cst {dimension_numbers = #tpu.dot_dimension_numbers<[1], [0], [0], [1], [0, 0, 1, 1], [], []>} : vector<128x128xbf16>, vector<128x128xbf16>, vector<128x128xf32> -> vector<128x128xf32>
    %25 = arith.truncf %24 : vector<128x128xf32> to vector<128x128xbf16>
    %c0_9 = arith.constant 0 : index
    %c0_10 = arith.constant 0 : index
    %c0_11 = arith.constant 0 : index
    %26 = vector.load %arg4[%c0_9, %c0_10, %c0_11] : memref<1x128x128xbf16, #tpu.memory_space<vmem>>, vector<1x128x128xbf16>
    %27 = vector.shape_cast %26 : vector<1x128x128xbf16> to vector<128x128xbf16>
    %cst_12 = arith.constant dense<0.000000e+00> : vector<128x128xf32>
    %28 = tpu.matmul %25, %27, %cst_12 {dimension_numbers = #tpu.dot_dimension_numbers<[1], [0], [0], [1], [0, 0, 1, 1], [], []>} : vector<128x128xbf16>, vector<128x128xbf16>, vector<128x128xf32> -> vector<128x128xf32>
    %c0_13 = arith.constant 0 : index
    %c0_14 = arith.constant 0 : index
    %c0_15 = arith.constant 0 : index
    %29 = vector.load %arg5[%c0_13, %c0_14, %c0_15] : memref<1x1x128xf32, #tpu.memory_space<vmem>>, vector<1x1x128xf32>
    %30 = vector.shape_cast %29 : vector<1x1x128xf32> to vector<1x128xf32>
    %31 = vector.broadcast %30 : vector<1x128xf32> to vector<128x128xf32>
    %32 = arith.addf %28, %31 : vector<128x128xf32>
    %c2_i32_16 = arith.constant 2 : i32
    %33 = arith.cmpi eq, %arg0, %c2_i32_16 : i32
    %true = arith.constant true
    %34 = arith.xori %33, %true : i1
    %35 = arith.extui %34 : i1 to i32
    %c0_i32_17 = arith.constant 0 : i32
    %36 = arith.cmpi ne, %35, %c0_i32_17 : i32
    scf.if %36 {
      %cst_19 = arith.constant 0.000000e+00 : f32
      %39 = vector.broadcast %cst_19 : f32 to vector<128x128xf32>
      %40 = arith.maximumf %32, %39 : vector<128x128xf32>
      %41 = arith.truncf %40 : vector<128x128xf32> to vector<128x128xbf16>
      %c0_i32_20 = arith.constant 0 : i32
      %42 = arith.cmpi eq, %18, %c0_i32_20 : i32
      %43 = arith.extui %42 : i1 to i32
      %c0_i32_21 = arith.constant 0 : i32
      %44 = arith.cmpi ne, %43, %c0_i32_21 : i32
      scf.if %44 {
        %c1 = arith.constant 1 : index
        %48 = arith.index_cast %20 : i32 to index
        %c0_24 = arith.constant 0 : index
        %49 = vector.load %arg8[%c1, %48, %c0_24] : memref<2x128x128xbf16, #tpu.memory_space<vmem>>, vector<1x128x128xbf16>
        %50 = vector.shape_cast %49 : vector<1x128x128xbf16> to vector<128x128xbf16>
        %51 = vector.shape_cast %41 : vector<128x128xbf16> to vector<1x128x128xbf16>
        tpu.vector_store %arg8[%c1, %48, %c0_24], %51 {strides = array<i32>} : memref<2x128x128xbf16, #tpu.memory_space<vmem>>, vector<1x128x128xbf16>,
      } else {
      }
      %true_22 = arith.constant true
      %45 = arith.xori %42, %true_22 : i1
      %46 = arith.extui %45 : i1 to i32
      %c0_i32_23 = arith.constant 0 : i32
      %47 = arith.cmpi ne, %46, %c0_i32_23 : i32
      scf.if %47 {
        %c0_24 = arith.constant 0 : index
        %48 = arith.index_cast %20 : i32 to index
        %c0_25 = arith.constant 0 : index
        %49 = vector.load %arg8[%c0_24, %48, %c0_25] : memref<2x128x128xbf16, #tpu.memory_space<vmem>>, vector<1x128x128xbf16>
        %50 = vector.shape_cast %49 : vector<1x128x128xbf16> to vector<128x128xbf16>
        %51 = vector.shape_cast %41 : vector<128x128xbf16> to vector<1x128x128xbf16>
        tpu.vector_store %arg8[%c0_24, %48, %c0_25], %51 {strides = array<i32>} : memref<2x128x128xbf16, #tpu.memory_space<vmem>>, vector<1x128x128xbf16>,
      } else {
      }
    } else {
    }
    %37 = arith.extui %33 : i1 to i32
    %c0_i32_18 = arith.constant 0 : i32
    %38 = arith.cmpi ne, %37, %c0_i32_18 : i32
    scf.if %38 {
      %c0_19 = arith.constant 0 : index
      %c0_20 = arith.constant 0 : index
      %39 = vector.load %arg6[%c0_19, %c0_20] : memref<128x128xf32, #tpu.memory_space<vmem>>, vector<128x128xf32>
      tpu.vector_store %arg6[%c0_19, %c0_20], %32 {strides = array<i32>} : memref<128x128xf32, #tpu.memory_space<vmem>>, vector<128x128xf32>,
    } else {
    }
    return
  }
  func.func @transform_2(%arg0: i32, %arg1: i32) -> (i32, i32, i32) {
    %c0_i32 = arith.constant 0 : i32
    %c0_i32_0 = arith.constant 0 : i32
    %c0_i32_1 = arith.constant 0 : i32
    return %arg0, %c0_i32, %c0_i32_0 : i32, i32, i32
  }
  func.func @transform_3(%arg0: i32, %arg1: i32) -> (i32, i32, i32) {
    %c0_i32 = arith.constant 0 : i32
    %c0_i32_0 = arith.constant 0 : i32
    %c0_i32_1 = arith.constant 0 : i32
    return %arg0, %c0_i32, %c0_i32_0 : i32, i32, i32
  }
  func.func @transform_4(%arg0: i32, %arg1: i32) -> (i32, i32) {
    %c2_i32 = arith.constant 2 : i32
    %0 = arith.cmpi eq, %arg0, %c2_i32 : i32
    %c0_i32 = arith.constant 0 : i32
    %1 = arith.select %0, %arg1, %c0_i32 : i32
    %c0_i32_0 = arith.constant 0 : i32
    %c0_i32_1 = arith.constant 0 : i32
    return %1, %c0_i32_0 : i32, i32
  }
}

</mosaic_0001>

<llo_original>
// kernel: tpu_custom_call.1
$region0: #{tpu_custom_call.1}
  #allocation0 [shape = 'u32[]', space=smem, size = 0x4, offset = 0x4, fixed_abs, tag = 'smem constant byte address 0x4 - core index']
  #allocation1 [shape = 'u32[144,128]{1,0:T(1,128)}', space=vmem, size = 0x12000, scoped, tag = 'internal scratch']
  #allocation2 [shape = 'bf16[128,128]{1,0:T(16,128)(2,1)}', space=vmem, size = 0x8000, scoped, tag = 'scratch operand']
  #allocation3 [shape = 'bf16[2,128,128]{2,1,0:T(16,128)(2,1)}', space=vmem, size = 0x10000, scoped, tag = 'scratch operand']
  #allocation9 [shape = 's32[]', space=sflag, size = 0x4, offset = 0, fixed_abs, tag = 'sflag constant byte address 0x0 - dummy sync flag']
  #allocation10 [shape = 's32[]', space=sflag, size = 0x4, offset = 0, fixed_abs, tag = 'sflag constant byte address 0x0 - dummy sync flag']
  #allocation11 [shape = 'u32[]', space=smem, size = 0x4, offset = 0x44, fixed_abs, tag = 'smem constant byte address 0x44 - assertion arg 0']
  #allocation12 [shape = 'u32[]', space=smem, size = 0x4, offset = 0x48, fixed_abs, tag = 'smem constant byte address 0x48 - assertion arg 1']
  #allocation14 [shape = 's32[]', space=sflag, size = 0x4, offset = 0, fixed_abs, tag = 'sflag constant byte address 0x0 - dummy sync flag']
  #allocation15 [shape = 's32[]', space=sflag, size = 0x4, offset = 0, fixed_abs, tag = 'sflag constant byte address 0x0 - dummy sync flag']
  %s0 = inlined_call_operand.hbm [shape: bf16[128,128], index: 0, kind: input, shape index: {}]
  %s1 = inlined_call_operand.hbm [shape: bf16[128,128], index: 1, kind: input, shape index: {}]
  %s2 = inlined_call_operand.hbm [shape: bf16[3,128,128], index: 2, kind: input, shape index: {}]
  %s3 = inlined_call_operand.vmem [shape: f32[3,1,128], index: 3, kind: input, shape index: {}]
  %s4 = inlined_call_operand.hbm [shape: f32[128,128], index: 4, kind: output, shape index: {}]
  %s5 = sld [smem:[#allocation0]]
  $region75: #{tpu_custom_call.1} parent=0
    _
  %s7 = ssub.s32 1, %s5
  %s8 = scalar_select 0, %s7, %s5
  $region1: #{tpu_custom_call.1} parent=0
    #allocation4 [shape = 'u8[65536]{0}', space=vmem, size = 0x10000, scoped, tag = 'input window, operand 2']
    #allocation5 [shape = 's32[2]{0}', space=sflag, size = 0x8, scoped, tag = 'scoped memory for tpu_custom_call.1']
    #allocation6 [shape = 's32[2]{0}', space=sflag, size = 0x8, scoped, tag = 'scoped memory for tpu_custom_call.1']
    #allocation7 [shape = 'u8[131072]{0}', space=vmem, size = 0x20000, scoped, tag = 'output window, operand 0']
    %9 = vsyncpa [#allocation5], 0
    %s10 = scalar_lea.sflag [#allocation5], 1
    %11 = vsyncpa %s10, 0
    %12 = vsyncpa [#allocation6], 0
    %s13 = scalar_lea.sflag [#allocation6], 1
    %14 = vsyncpa %s13, 0
    loop: start=0, step=1, limit=5
    $region2: #{tpu_custom_call.1} parent=1 // loop_pre_header
      _
    $region3: #{tpu_custom_call.1} parent=1 // loop_header
      %s16 = sphi 0, %s20
      %p17 = scmp.ge.s32.totalorder %s16, 5
      %s23 = sphi 0, %s35
      %s24 = sphi 0, %s31
      %s25 = sphi 0, %s23
      %s26 = sphi 0, %s24
      %s27 = sphi 0, %s25
      %s28 = sphi 0, %s26
      %s38 = sphi 0, %s40
      %s41 = sphi 0, %s38
      %s42 = sphi 0, %s41
      %s58 = sphi 0, %s42
      %s64 = sphi 0, %s66
      %s67 = sphi 0, %s64
      %s68 = sphi 0, %s67
      %s84 = sphi 0, %s68
      %s94 = sphi 0, %s96
      %s97 = sphi 0, %s94
      %s98 = sphi 0, %s97
      %s114 = sphi 0, %s98
    $region4: #{tpu_custom_call.1} parent=1 // loop_header_branch
      %19 = sbr.rel (%p17) target = $region8
    $region5: #{tpu_custom_call.1} parent=1 // loop_body
      %s21 = ssub.s32 %s16, 1
      %s22 = ssub.s32 %s16, 2
      %s29 = sadd.s32 1, %s24
      %p30 = scmp.ge.s32.totalorder %s29, 1
      %s31 = scalar_select %p30, 0, %s29
      %s32 = sadd.s32 1, %s23
      %s33 = scalar_select %p30, %s32, %s23
      %p34 = scmp.ge.s32.totalorder %s33, 3
      %s35 = scalar_select %p34, 0, %s33
      %s36 = ssub.s32 %s23, %s35
      %p37 = scmp.eq.s32.totalorder %s36, 0
      %s39 = sadd.s32 %s38, 1
      %s40 = scalar_select %p37, %s38, %s39
      %p43 = pneg %p37
      %p44 = scmp.eq.s32.totalorder %s16, 2
      %p45 = por %p43, %p44
      %p46 = scmp.ne.s32.totalorder %s38, %s41
      %p47 = scmp.eq.s32.totalorder %s16, 0
      %p48 = por %p46, %p47
      %p49 = scmp.ne.s32.totalorder %s38, %s41
      %p50 = scmp.eq.s32.totalorder %s21, 2
      %p51 = por %p49, %p50
      %p52 = scmp.ne.s32.totalorder %s41, %s42
      %p53 = scmp.eq.s32.totalorder %s21, 0
      %p54 = por %p52, %p53
      %p55 = scmp.ne.s32.totalorder %s41, %s42
      %p56 = scmp.eq.s32.totalorder %s22, 2
      %p57 = por %p55, %p56
      %p59 = scmp.ne.s32.totalorder %s42, %s58
      %p60 = scmp.eq.s32.totalorder %s22, 0
      %p61 = por %p59, %p60
      %s62 = ssub.s32 %s23, %s35
      %p63 = scmp.eq.s32.totalorder %s62, 0
      %s65 = sadd.s32 %s64, 1
      %s66 = scalar_select %p63, %s64, %s65
      %p69 = pneg %p63
      %p70 = scmp.eq.s32.totalorder %s16, 2
      %p71 = por %p69, %p70
      %p72 = scmp.ne.s32.totalorder %s64, %s67
      %p73 = scmp.eq.s32.totalorder %s16, 0
      %p74 = por %p72, %p73
      %p75 = scmp.ne.s32.totalorder %s64, %s67
      %p76 = scmp.eq.s32.totalorder %s21, 2
      %p77 = por %p75, %p76
      %p78 = scmp.ne.s32.totalorder %s67, %s68
      %p79 = scmp.eq.s32.totalorder %s21, 0
      %p80 = por %p78, %p79
      %p81 = scmp.ne.s32.totalorder %s67, %s68
      %p82 = scmp.eq.s32.totalorder %s22, 2
      %p83 = por %p81, %p82
      %p85 = scmp.ne.s32.totalorder %s68, %s84
      %p86 = scmp.eq.s32.totalorder %s22, 0
      %p87 = por %p85, %p86
      %p88 = scmp.eq.s32.totalorder %s23, 2
      %s89 = scalar_select %p88, %s24, 0
      %p90 = scmp.eq.s32.totalorder %s35, 2
      %s91 = scalar_select %p90, %s31, 0
      %s92 = ssub.s32 %s89, %s91
      %p93 = scmp.eq.s32.totalorder %s92, 0
      %s95 = sadd.s32 %s94, 1
      %s96 = scalar_select %p93, %s94, %s95
      %p99 = pneg %p93
      %p100 = scmp.eq.s32.totalorder %s16, 2
      %p101 = por %p99, %p100
      %p102 = scmp.ne.s32.totalorder %s94, %s97
      %p103 = scmp.eq.s32.totalorder %s16, 0
      %p104 = por %p102, %p103
      %p105 = scmp.ne.s32.totalorder %s94, %s97
      %p106 = scmp.eq.s32.totalorder %s21, 2
      %p107 = por %p105, %p106
      %p108 = scmp.ne.s32.totalorder %s97, %s98
      %p109 = scmp.eq.s32.totalorder %s21, 0
      %p110 = por %p108, %p109
      %p111 = scmp.ne.s32.totalorder %s97, %s98
      %p112 = scmp.eq.s32.totalorder %s22, 2
      %p113 = por %p111, %p112
      %p115 = scmp.ne.s32.totalorder %s98, %s114
      %p116 = scmp.eq.s32.totalorder %s22, 0
      %p117 = por %p115, %p116
      %p118 = scmp.le.s32.totalorder 1, %s16
      %p119 = scmp.lt.s32.totalorder %s16, 4
      %p120 = pnand %p118, %p119
      %p121 = pneg %p120
      // Predicated region
      $region9: #{tpu_custom_call.1} parent=5 // pred_check
        _
      $region10: #{tpu_custom_call.1} parent=5 // pred_check_branch
        %123 = sbr.rel (%p120) target = $region12
      $region11: #{tpu_custom_call.1} parent=5 // pred_region
        %s124 = ssub.s32 %s16, 1
      $region12: #{tpu_custom_call.1} parent=5 // pred_fallthru
        _
      %p125 = scmp.lt.s32.totalorder %s16, 3
      // Predicated region
      $region13: #{tpu_custom_call.1} parent=5 // pred_check
        %p126 = pneg %p125
      $region14: #{tpu_custom_call.1} parent=5 // pred_check_branch
        %128 = sbr.rel (%p126) target = $region16
      $region15: #{tpu_custom_call.1} parent=5 // pred_region
        // Predicated region
        $region17: #{tpu_custom_call.1} parent=15 // pred_check
          %p129 = pneg %p48
        $region18: #{tpu_custom_call.1} parent=15 // pred_check_branch
          %131 = sbr.rel (%p129) target = $region20
        $region19: #{tpu_custom_call.1} parent=15 // pred_region
          %s132 = sand.u32 %s38, 1
          %s133 = scalar_lea.sflag [#allocation5], %s132
          %s134 = sand.u32 %s38, 1
          %s135 = smul.addr %s134, 64
          %s136 = scalar_lea.vmem [#allocation4], %s135
          %s138 = ssub.s32 1024, 1024
          %139 = vsyncadd %s133, %s138
          %s140 = smul.addr %s23, 16
          %s141 = smul.addr %s140, 64
          %s142 = scalar_lea.hbm %s2, %s141
          %s143 = sshll.u32 %s136, 4
          %s144 = int_to_ptr.vmem [resolvable:$true] %s143
          %149 = dma.hbm_to_vmem [thread:$0]  %s142, 1024, %s144, %s133, 64, 64, 4
        $region20: #{tpu_custom_call.1} parent=15 // pred_fallthru
          _
        // Predicated region
        $region21: #{tpu_custom_call.1} parent=15 // pred_check
          %p150 = pneg %p74
        $region22: #{tpu_custom_call.1} parent=15 // pred_check_branch
          %152 = sbr.rel (%p150) target = $region24
        $region23: #{tpu_custom_call.1} parent=15 // pred_region
          %p153 = scmp.lt.s32.totalorder %s23, 2
          %s154 = scalar_select %p153, %s23, 2
          %s155 = scalar_lea.vmem %s3, %s154
        $region24: #{tpu_custom_call.1} parent=15 // pred_fallthru
          _
      $region16: #{tpu_custom_call.1} parent=5 // pred_fallthru
        _
      %p156 = scmp.le.s32.totalorder 1, %s16
      %p157 = scmp.lt.s32.totalorder %s16, 4
      %p158 = pnand %p156, %p157
      %p159 = pneg %p158
      // Predicated region
      $region25: #{tpu_custom_call.1} parent=5 // pred_check
        _
      $region26: #{tpu_custom_call.1} parent=5 // pred_check_branch
        %161 = sbr.rel (%p158) target = $region28
      $region27: #{tpu_custom_call.1} parent=5 // pred_region
        %s162 = ssub.s32 %s16, 1
        %s163 = sand.u32 %s41, 1
        %s164 = scalar_lea.sflag [#allocation5], %s163
        %s165 = sand.u32 %s41, 1
        %s166 = smul.addr %s165, 64
        %s167 = scalar_lea.vmem [#allocation4], %s166
        // Predicated region
        $region29: #{tpu_custom_call.1} parent=27 // pred_check
          %p168 = pneg %p54
        $region30: #{tpu_custom_call.1} parent=27 // pred_check_branch
          %170 = sbr.rel (%p168) target = $region32
        $region31: #{tpu_custom_call.1} parent=27 // pred_region
          %171 = dma.done %s164, 1024
        $region32: #{tpu_custom_call.1} parent=27 // pred_fallthru
          _
        %s172 = sand.u32 %s41, 1
        %s173 = scalar_lea.sflag [#allocation5], %s172
        %s174 = sand.u32 %s41, 1
        %s175 = smul.addr %s174, 64
        %s176 = scalar_lea.vmem [#allocation4], %s175
        %p177 = pneg %p54
        %p178 = pneg %p51
        %p179 = scmp.lt.s32.totalorder %s25, 2
        %s180 = scalar_select %p179, %s25, 2
        %s181 = scalar_lea.vmem %s3, %s180
        %p182 = pneg %p80
        %p183 = pneg %p77
        %p184 = pneg %p110
        %p185 = pneg %p107
        %s186 = sand.u32 %s97, 1
        %s187 = scalar_lea.sflag [#allocation6], %s186
        %s188 = sand.u32 %s97, 1
        %s189 = smul.addr %s188, 128
        %s190 = scalar_lea.vmem [#allocation7], %s189
        %p191 = scmp.lt.s32.totalorder %s25, 2
        %s192 = scalar_select %p191, %s25, 2
        %s193 = scalar_lea.vmem %s3, %s192
        %p194 = scmp.eq.s32.totalorder %s25, 2
        %s195 = scalar_select %p194, %s26, 0
        %s196 = smul.u32 16, %s195
        %p198 = scmp.eq.s32.totalorder %s25, 0
        %p199 = scmp.eq.s32.totalorder %s26, 0
        %p200 = pnand %p198, %p199
        %p201 = pneg %p200
        // Predicated region
        $region33: #{tpu_custom_call.1} parent=27 // pred_check
          _
        $region34: #{tpu_custom_call.1} parent=27 // pred_check_branch
          %203 = sbr.rel (%p200) target = $region36
        $region35: #{tpu_custom_call.1} parent=27 // pred_region
          $region37: #{tpu_custom_call.1} parent=35
            #allocation8 [shape = 's32[1]{0}', space=sflag, size = 0x4, scoped, tag = 'scoped memory for tpu_custom_call.1']
            // Predicated region
            $region38: #{tpu_custom_call.1} parent=37 // pred_check
              _
            $region39: #{tpu_custom_call.1} parent=37 // pred_check_branch
              %205 = sbr.rel target = $region41
            $region40: #{tpu_custom_call.1} parent=37 // pred_region
              %206 = sst [smem:[#allocation11]] [#allocation10]
              %207 = sst [smem:[#allocation12]] [#allocation9]
            $region41: #{tpu_custom_call.1} parent=37 // pred_fallthru
              _
            %209 = shalt.err (0)
            %s211 = sshll.u32 [#allocation2], 4
            %s212 = int_to_ptr.vmem [resolvable:$true] %s211
            %214 = dma.hbm_to_vmem [thread:$0]  %s1, 1024, %s212, [#allocation8]
            %s215 = smul.u32 4, 16
            %s216 = smul.u32 %s215, 1
            %s217 = sshll.u32 %s216, 4
            %218 = dma.done [#allocation8], %s217
          $region42: #{tpu_custom_call.1} parent=35
            #allocation13 [shape = 's32[1]{0}', space=sflag, size = 0x4, scoped, tag = 'scoped memory for tpu_custom_call.1']
            // Predicated region
            $region43: #{tpu_custom_call.1} parent=42 // pred_check
              _
            $region44: #{tpu_custom_call.1} parent=42 // pred_check_branch
              %220 = sbr.rel target = $region46
            $region45: #{tpu_custom_call.1} parent=42 // pred_region
              %221 = sst [smem:[#allocation11]] [#allocation15]
              %222 = sst [smem:[#allocation12]] [#allocation14]
            $region46: #{tpu_custom_call.1} parent=42 // pred_fallthru
              _
            %224 = shalt.err (0)
            %s226 = sshll.u32 [#allocation3], 4
            %s227 = int_to_ptr.vmem [resolvable:$true] %s226
            %229 = dma.hbm_to_vmem [thread:$0]  %s0, 1024, %s227, [#allocation13]
            %s230 = smul.u32 4, 16
            %s231 = smul.u32 %s230, 1
            %s232 = sshll.u32 %s231, 4
            %233 = dma.done [#allocation13], %s232
        $region36: #{tpu_custom_call.1} parent=27 // pred_fallthru
          _
        %s234 = smul.u32 %s26, 128
        %s235 = sshra.s32 %s234, 4
        %s236 = sand.u32 %s234, 15
        %s237 = smul.addr %s235, 8
        %s238 = scalar_lea.vmem [#allocation2], %s237
        %v239 = vld [vmem:[%s238] sm:$0xff]
        %v240 = vld [vmem:[%s238 + $0x8] sm:$0xff]
        %v241 = vld [vmem:[%s238 + $0x10] sm:$0xff]
        %v242 = vld [vmem:[%s238 + $0x18] sm:$0xff]
        %v243 = vld [vmem:[%s238 + $0x20] sm:$0xff]
        %v244 = vld [vmem:[%s238 + $0x28] sm:$0xff]
        %v245 = vld [vmem:[%s238 + $0x30] sm:$0xff]
        %v246 = vld [vmem:[%s238 + $0x38] sm:$0xff]
        %p247 = scmp.lt.s32.totalorder %s25, 0
        %s248 = ssub.s32 0, %s25
        %s249 = scalar_select %p247, %s248, %s25
        %s250 = sand.u32 %s249, 1
        %s251 = ssub.s32 0, %s250
        %s252 = scalar_select %p247, %s251, %s250
        %p253 = scmp.ne.s32.totalorder %s252, 0
        %p254 = scmp.lt.s32.totalorder %s252, 0
        %p255 = pnand %p254, %p253
        %p256 = pneg %p255
        %s257 = sadd.s32 %s252, 2
        %s258 = scalar_select %p256, %s257, %s252
        %s259 = smul.u32 %s258, 8
        %s260 = smul.addr %s259, 8
        %s261 = scalar_lea.vmem [#allocation3], %s260
        %v262 = vld [vmem:[%s261] sm:$0xff]
        %v263 = vld [vmem:[%s261 + $0x8] sm:$0xff]
        %v264 = vld [vmem:[%s261 + $0x10] sm:$0xff]
        %v265 = vld [vmem:[%s261 + $0x18] sm:$0xff]
        %v266 = vld [vmem:[%s261 + $0x20] sm:$0xff]
        %v267 = vld [vmem:[%s261 + $0x28] sm:$0xff]
        %v268 = vld [vmem:[%s261 + $0x30] sm:$0xff]
        %v269 = vld [vmem:[%s261 + $0x38] sm:$0xff]
        %270 = vmatprep.subr.bf16.mxu0 0
        %271 = vmatpush1.bf16.msra.mxu0 %v262
        %272 = vmatprep.subr.bf16.mxu0 0
        %273 = vmatpush1.bf16.msra.mxu0 %v263
        %274 = vmatprep.subr.bf16.mxu0 0
        %275 = vmatpush1.bf16.msra.mxu0 %v264
        %276 = vmatprep.subr.bf16.mxu0 0
        %277 = vmatpush1.bf16.msra.mxu0 %v265
        %278 = vmatprep.subr.bf16.mxu0 0
        %279 = vmatpush1.bf16.msra.mxu0 %v266
        %280 = vmatprep.subr.bf16.mxu0 0
        %281 = vmatpush1.bf16.msra.mxu0 %v267
        %282 = vmatprep.subr.bf16.mxu0 0
        %283 = vmatpush1.bf16.msra.mxu0 %v268
        %284 = vmatprep.subr.bf16.mxu0 0
        %285 = vmatpush1.bf16.msra.mxu0 %v269
        %286 = vmatprep.subr.bf16.mxu0 0
        %287 = vmatpush1.bf16.msra.mxu0 0
        %288 = vmatprep.subr.bf16.mxu0 0
        %289 = vmatpush1.bf16.msra.mxu0 0
        %290 = vmatprep.subr.bf16.mxu0 0
        %291 = vmatpush1.bf16.msra.mxu0 0
        %292 = vmatprep.subr.bf16.mxu0 0
        %293 = vmatpush1.bf16.msra.mxu0 0
        %294 = vmatprep.subr.bf16.mxu0 0
        %295 = vmatpush1.bf16.msra.mxu0 0
        %296 = vmatprep.subr.bf16.mxu0 0
        %297 = vmatpush1.bf16.msra.mxu0 0
        %298 = vmatprep.subr.bf16.mxu0 0
        %299 = vmatpush1.bf16.msra.mxu0 0
        %300 = vmatprep.subr.bf16.mxu0 0
        %301 = vmatpush1.bf16.msra.mxu0 0
        %302 = vmatprep.mubr.bf16.mxu0 0
        %303 = vmatmul.mubr.bf16.gmra.mrb[0].mxu0 %v239
        %v304 = vpop.f32.mrb[0].mxu0
        %v305 = vadd.f32 0.0, %v304
        %v306 = vpop.f32.mrb[0].mxu0
        %v307 = vpop.f32.mrb[0].mxu0
        %v308 = vadd.f32 0.0, %v307
        %v309 = vpop.f32.mrb[0].mxu0
        %310 = vmatprep.mubr.bf16.mxu0 0
        %311 = vmatmul.mubr.bf16.gmra.mrb[0].mxu0 %v240
        %v312 = vpop.f32.mrb[0].mxu0
        %v313 = vadd.f32 0.0, %v312
        %v314 = vpop.f32.mrb[0].mxu0
        %v315 = vpop.f32.mrb[0].mxu0
        %v316 = vadd.f32 0.0, %v315
        %v317 = vpop.f32.mrb[0].mxu0
        %318 = vmatprep.mubr.bf16.mxu0 0
        %319 = vmatmul.mubr.bf16.gmra.mrb[0].mxu0 %v241
        %v320 = vpop.f32.mrb[0].mxu0
        %v321 = vadd.f32 0.0, %v320
        %v322 = vpop.f32.mrb[0].mxu0
        %v323 = vpop.f32.mrb[0].mxu0
        %v324 = vadd.f32 0.0, %v323
        %v325 = vpop.f32.mrb[0].mxu0
        %326 = vmatprep.mubr.bf16.mxu0 0
        %327 = vmatmul.mubr.bf16.gmra.mrb[0].mxu0 %v242
        %v328 = vpop.f32.mrb[0].mxu0
        %v329 = vadd.f32 0.0, %v328
        %v330 = vpop.f32.mrb[0].mxu0
        %v331 = vpop.f32.mrb[0].mxu0
        %v332 = vadd.f32 0.0, %v331
        %v333 = vpop.f32.mrb[0].mxu0
        %334 = vmatprep.mubr.bf16.mxu0 0
        %335 = vmatmul.mubr.bf16.gmra.mrb[0].mxu0 %v243
        %v336 = vpop.f32.mrb[0].mxu0
        %v337 = vadd.f32 0.0, %v336
        %v338 = vpop.f32.mrb[0].mxu0
        %v339 = vpop.f32.mrb[0].mxu0
        %v340 = vadd.f32 0.0, %v339
        %v341 = vpop.f32.mrb[0].mxu0
        %342 = vmatprep.mubr.bf16.mxu0 0
        %343 = vmatmul.mubr.bf16.gmra.mrb[0].mxu0 %v244
        %v344 = vpop.f32.mrb[0].mxu0
        %v345 = vadd.f32 0.0, %v344
        %v346 = vpop.f32.mrb[0].mxu0
        %v347 = vpop.f32.mrb[0].mxu0
        %v348 = vadd.f32 0.0, %v347
        %v349 = vpop.f32.mrb[0].mxu0
        %350 = vmatprep.mubr.bf16.mxu0 0
        %351 = vmatmul.mubr.bf16.gmra.mrb[0].mxu0 %v245
        %v352 = vpop.f32.mrb[0].mxu0
        %v353 = vadd.f32 0.0, %v352
        %v354 = vpop.f32.mrb[0].mxu0
        %v355 = vpop.f32.mrb[0].mxu0
        %v356 = vadd.f32 0.0, %v355
        %v357 = vpop.f32.mrb[0].mxu0
        %358 = vmatprep.mubr.bf16.mxu0 0
        %359 = vmatmul.mubr.bf16.gmra.mrb[0].mxu0 %v246
        %v360 = vpop.f32.mrb[0].mxu0
        %v361 = vadd.f32 0.0, %v360
        %v362 = vpop.f32.mrb[0].mxu0
        %v363 = vpop.f32.mrb[0].mxu0
        %v364 = vadd.f32 0.0, %v363
        %v365 = vpop.f32.mrb[0].mxu0
        %366 = vdwg.mxu0
        %v367 = vpack.c.bf16 %v308, %v305
        %v368 = vpack.c.bf16 %v316, %v313
        %v369 = vpack.c.bf16 %v324, %v321
        %v370 = vpack.c.bf16 %v332, %v329
        %v371 = vpack.c.bf16 %v340, %v337
        %v372 = vpack.c.bf16 %v348, %v345
        %v373 = vpack.c.bf16 %v356, %v353
        %v374 = vpack.c.bf16 %v364, %v361
        %v375 = vld [vmem:[%s167] sm:$0xf]
        %v376 = vld [vmem:[%s167 + $0x4] sm:$0xf]
        %v377 = vld [vmem:[%s167 + $0x8] sm:$0xf]
        %v378 = vld [vmem:[%s167 + $0xc] sm:$0xf]
        %v379 = vld [vmem:[%s167 + $0x10] sm:$0xf]
        %v380 = vld [vmem:[%s167 + $0x14] sm:$0xf]
        %v381 = vld [vmem:[%s167 + $0x18] sm:$0xf]
        %v382 = vld [vmem:[%s167 + $0x1c] sm:$0xf]
        %v383 = vld [vmem:[%s167 + $0x20] sm:$0xf]
        %v384 = vld [vmem:[%s167 + $0x24] sm:$0xf]
        %v385 = vld [vmem:[%s167 + $0x28] sm:$0xf]
        %v386 = vld [vmem:[%s167 + $0x2c] sm:$0xf]
        %v387 = vld [vmem:[%s167 + $0x30] sm:$0xf]
        %v388 = vld [vmem:[%s167 + $0x34] sm:$0xf]
        %v389 = vld [vmem:[%s167 + $0x38] sm:$0xf]
        %v390 = vld [vmem:[%s167 + $0x3c] sm:$0xf]
        %v391 = vld [vmem:[%s193] sm:$0x1]
        %v393 = vlaneseq
        %v394 = vshrl.u32 %v393, 7
        %v395 = vsub.s32 0, %v394
        %v396 = vrot.slane %v391, %v395
        %v414 = vunpack.c.l.b16 %v375
        %v415 = vunpack.c.l.b16 %v376
        %v416 = vunpack.c.l.b16 %v377
        %v417 = vunpack.c.l.b16 %v378
        %v418 = vunpack.c.l.b16 %v379
        %v419 = vunpack.c.l.b16 %v380
        %v420 = vunpack.c.l.b16 %v381
        %v421 = vunpack.c.l.b16 %v382
        %v422 = vunpack.c.l.b16 %v383
        %v423 = vunpack.c.l.b16 %v384
        %v424 = vunpack.c.l.b16 %v385
        %v425 = vunpack.c.l.b16 %v386
        %v426 = vunpack.c.l.b16 %v387
        %v427 = vunpack.c.l.b16 %v388
        %v428 = vunpack.c.l.b16 %v389
        %v429 = vunpack.c.l.b16 %v390
        %v430 = vpack.c.b16 %v415, %v414
        %v431 = vpack.c.b16 %v417, %v416
        %v432 = vpack.c.b16 %v419, %v418
        %v433 = vpack.c.b16 %v421, %v420
        %v434 = vpack.c.b16 %v423, %v422
        %v435 = vpack.c.b16 %v425, %v424
        %v436 = vpack.c.b16 %v427, %v426
        %v437 = vpack.c.b16 %v429, %v428
        %446 = vmatprep.subr.bf16.mxu0 0
        %447 = vmatpush1.bf16.msra.mxu0 %v430
        %448 = vmatprep.subr.bf16.mxu0 0
        %449 = vmatpush1.bf16.msra.mxu0 %v431
        %450 = vmatprep.subr.bf16.mxu0 0
        %451 = vmatpush1.bf16.msra.mxu0 %v432
        %452 = vmatprep.subr.bf16.mxu0 0
        %453 = vmatpush1.bf16.msra.mxu0 %v433
        %454 = vmatprep.subr.bf16.mxu0 0
        %455 = vmatpush1.bf16.msra.mxu0 %v434
        %456 = vmatprep.subr.bf16.mxu0 0
        %457 = vmatpush1.bf16.msra.mxu0 %v435
        %458 = vmatprep.subr.bf16.mxu0 0
        %459 = vmatpush1.bf16.msra.mxu0 %v436
        %460 = vmatprep.subr.bf16.mxu0 0
        %461 = vmatpush1.bf16.msra.mxu0 %v437
        %462 = vmatprep.subr.bf16.mxu0 0
        %463 = vmatpush1.bf16.msra.mxu0 0
        %464 = vmatprep.subr.bf16.mxu0 0
        %465 = vmatpush1.bf16.msra.mxu0 0
        %466 = vmatprep.subr.bf16.mxu0 0
        %467 = vmatpush1.bf16.msra.mxu0 0
        %468 = vmatprep.subr.bf16.mxu0 0
        %469 = vmatpush1.bf16.msra.mxu0 0
        %470 = vmatprep.subr.bf16.mxu0 0
        %471 = vmatpush1.bf16.msra.mxu0 0
        %472 = vmatprep.subr.bf16.mxu0 0
        %473 = vmatpush1.bf16.msra.mxu0 0
        %474 = vmatprep.subr.bf16.mxu0 0
        %475 = vmatpush1.bf16.msra.mxu0 0
        %476 = vmatprep.subr.bf16.mxu0 0
        %477 = vmatpush1.bf16.msra.mxu0 0
        %478 = vmatprep.mubr.bf16.mxu0 0
        %479 = vmatmul.mubr.bf16.gmra.mrb[0].mxu0 %v367
        %v480 = vpop.f32.mrb[0].mxu0
        %v481 = vadd.f32 %v396, %v480
        %v482 = vpop.f32.mrb[0].mxu0
        %v483 = vpop.f32.mrb[0].mxu0
        %v484 = vadd.f32 %v396, %v483
        %v485 = vpop.f32.mrb[0].mxu0
        %486 = vmatprep.mubr.bf16.mxu0 0
        %487 = vmatmul.mubr.bf16.gmra.mrb[0].mxu0 %v368
        %v488 = vpop.f32.mrb[0].mxu0
        %v489 = vadd.f32 %v396, %v488
        %v490 = vpop.f32.mrb[0].mxu0
        %v491 = vpop.f32.mrb[0].mxu0
        %v492 = vadd.f32 %v396, %v491
        %v493 = vpop.f32.mrb[0].mxu0
        %494 = vmatprep.mubr.bf16.mxu0 0
        %495 = vmatmul.mubr.bf16.gmra.mrb[0].mxu0 %v369
        %v496 = vpop.f32.mrb[0].mxu0
        %v497 = vadd.f32 %v396, %v496
        %v498 = vpop.f32.mrb[0].mxu0
        %v499 = vpop.f32.mrb[0].mxu0
        %v500 = vadd.f32 %v396, %v499
        %v501 = vpop.f32.mrb[0].mxu0
        %502 = vmatprep.mubr.bf16.mxu0 0
        %503 = vmatmul.mubr.bf16.gmra.mrb[0].mxu0 %v370
        %v504 = vpop.f32.mrb[0].mxu0
        %v505 = vadd.f32 %v396, %v504
        %v506 = vpop.f32.mrb[0].mxu0
        %v507 = vpop.f32.mrb[0].mxu0
        %v508 = vadd.f32 %v396, %v507
        %v509 = vpop.f32.mrb[0].mxu0
        %510 = vmatprep.mubr.bf16.mxu0 0
        %511 = vmatmul.mubr.bf16.gmra.mrb[0].mxu0 %v371
        %v512 = vpop.f32.mrb[0].mxu0
        %v513 = vadd.f32 %v396, %v512
        %v514 = vpop.f32.mrb[0].mxu0
        %v515 = vpop.f32.mrb[0].mxu0
        %v516 = vadd.f32 %v396, %v515
        %v517 = vpop.f32.mrb[0].mxu0
        %518 = vmatprep.mubr.bf16.mxu0 0
        %519 = vmatmul.mubr.bf16.gmra.mrb[0].mxu0 %v372
        %v520 = vpop.f32.mrb[0].mxu0
        %v521 = vadd.f32 %v396, %v520
        %v522 = vpop.f32.mrb[0].mxu0
        %v523 = vpop.f32.mrb[0].mxu0
        %v524 = vadd.f32 %v396, %v523
        %v525 = vpop.f32.mrb[0].mxu0
        %526 = vmatprep.mubr.bf16.mxu0 0
        %527 = vmatmul.mubr.bf16.gmra.mrb[0].mxu0 %v373
        %v528 = vpop.f32.mrb[0].mxu0
        %v529 = vadd.f32 %v396, %v528
        %v530 = vpop.f32.mrb[0].mxu0
        %v531 = vpop.f32.mrb[0].mxu0
        %v532 = vadd.f32 %v396, %v531
        %v533 = vpop.f32.mrb[0].mxu0
        %534 = vmatprep.mubr.bf16.mxu0 0
        %535 = vmatmul.mubr.bf16.gmra.mrb[0].mxu0 %v374
        %v536 = vpop.f32.mrb[0].mxu0
        %v537 = vadd.f32 %v396, %v536
        %v538 = vpop.f32.mrb[0].mxu0
        %v539 = vpop.f32.mrb[0].mxu0
        %v540 = vadd.f32 %v396, %v539
        %v541 = vpop.f32.mrb[0].mxu0
        %542 = vdwg.mxu0
        %p543 = scmp.eq.s32.totalorder %s25, 2
        %p544 = scmp.ne.s32.totalorder %s25, 2
        // Predicated region
        $region47: #{tpu_custom_call.1} parent=27 // pred_check
          %p545 = pneg %p544
        $region48: #{tpu_custom_call.1} parent=27 // pred_check_branch
          %547 = sbr.rel (%p545) target = $region50
        $region49: #{tpu_custom_call.1} parent=27 // pred_region
          %v548 = vmax.f32 %v481, 0.0
          %v549 = vmax.f32 %v484, 0.0
          %v550 = vmax.f32 %v489, 0.0
          %v551 = vmax.f32 %v492, 0.0
          %v552 = vmax.f32 %v497, 0.0
          %v553 = vmax.f32 %v500, 0.0
          %v554 = vmax.f32 %v505, 0.0
          %v555 = vmax.f32 %v508, 0.0
          %v556 = vmax.f32 %v513, 0.0
          %v557 = vmax.f32 %v516, 0.0
          %v558 = vmax.f32 %v521, 0.0
          %v559 = vmax.f32 %v524, 0.0
          %v560 = vmax.f32 %v529, 0.0
          %v561 = vmax.f32 %v532, 0.0
          %v562 = vmax.f32 %v537, 0.0
          %v563 = vmax.f32 %v540, 0.0
          %v564 = vpack.c.bf16 %v549, %v548
          %v565 = vpack.c.bf16 %v551, %v550
          %v566 = vpack.c.bf16 %v553, %v552
          %v567 = vpack.c.bf16 %v555, %v554
          %v568 = vpack.c.bf16 %v557, %v556
          %v569 = vpack.c.bf16 %v559, %v558
          %v570 = vpack.c.bf16 %v561, %v560
          %v571 = vpack.c.bf16 %v563, %v562
          %p572 = scmp.eq.s32.totalorder %s258, 0
          // Predicated region
          $region51: #{tpu_custom_call.1} parent=49 // pred_check
            %p573 = pneg %p572
          $region52: #{tpu_custom_call.1} parent=49 // pred_check_branch
            %575 = sbr.rel (%p573) target = $region54
          $region53: #{tpu_custom_call.1} parent=49 // pred_region
            %s576 = sadd.s32 %s235, 8
            %s577 = smul.addr %s576, 8
            %s578 = scalar_lea.vmem [#allocation3], %s577
            %579 = vst [vmem:[%s578] sm:$0xff] %v564
            %580 = vst [vmem:[%s578 + $0x8] sm:$0xff] %v565
            %581 = vst [vmem:[%s578 + $0x10] sm:$0xff] %v566
            %582 = vst [vmem:[%s578 + $0x18] sm:$0xff] %v567
            %583 = vst [vmem:[%s578 + $0x20] sm:$0xff] %v568
            %584 = vst [vmem:[%s578 + $0x28] sm:$0xff] %v569
            %585 = vst [vmem:[%s578 + $0x30] sm:$0xff] %v570
            %586 = vst [vmem:[%s578 + $0x38] sm:$0xff] %v571
          $region54: #{tpu_custom_call.1} parent=49 // pred_fallthru
            _
          %p587 = scmp.ne.s32.totalorder %s258, 0
          // Predicated region
          $region55: #{tpu_custom_call.1} parent=49 // pred_check
            %p588 = pneg %p587
          $region56: #{tpu_custom_call.1} parent=49 // pred_check_branch
            %590 = sbr.rel (%p588) target = $region58
          $region57: #{tpu_custom_call.1} parent=49 // pred_region
            %s591 = smul.addr %s235, 8
            %s592 = scalar_lea.vmem [#allocation3], %s591
            %593 = vst [vmem:[%s592] sm:$0xff] %v564
            %594 = vst [vmem:[%s592 + $0x8] sm:$0xff] %v565
            %595 = vst [vmem:[%s592 + $0x10] sm:$0xff] %v566
            %596 = vst [vmem:[%s592 + $0x18] sm:$0xff] %v567
            %597 = vst [vmem:[%s592 + $0x20] sm:$0xff] %v568
            %598 = vst [vmem:[%s592 + $0x28] sm:$0xff] %v569
            %599 = vst [vmem:[%s592 + $0x30] sm:$0xff] %v570
            %600 = vst [vmem:[%s592 + $0x38] sm:$0xff] %v571
          $region58: #{tpu_custom_call.1} parent=49 // pred_fallthru
            _
        $region50: #{tpu_custom_call.1} parent=27 // pred_fallthru
          _
        // Predicated region
        $region59: #{tpu_custom_call.1} parent=27 // pred_check
          %p601 = pneg %p543
        $region60: #{tpu_custom_call.1} parent=27 // pred_check_branch
          %603 = sbr.rel (%p601) target = $region62
        $region61: #{tpu_custom_call.1} parent=27 // pred_region
          %604 = vst [vmem:[%s190] sm:$0xff] %v481
          %605 = vst [vmem:[%s190 + $0x8] sm:$0xff] %v484
          %606 = vst [vmem:[%s190 + $0x10] sm:$0xff] %v489
          %607 = vst [vmem:[%s190 + $0x18] sm:$0xff] %v492
          %608 = vst [vmem:[%s190 + $0x20] sm:$0xff] %v497
          %609 = vst [vmem:[%s190 + $0x28] sm:$0xff] %v500
          %610 = vst [vmem:[%s190 + $0x30] sm:$0xff] %v505
          %611 = vst [vmem:[%s190 + $0x38] sm:$0xff] %v508
          %612 = vst [vmem:[%s190 + $0x40] sm:$0xff] %v513
          %613 = vst [vmem:[%s190 + $0x48] sm:$0xff] %v516
          %614 = vst [vmem:[%s190 + $0x50] sm:$0xff] %v521
          %615 = vst [vmem:[%s190 + $0x58] sm:$0xff] %v524
          %616 = vst [vmem:[%s190 + $0x60] sm:$0xff] %v529
          %617 = vst [vmem:[%s190 + $0x68] sm:$0xff] %v532
          %618 = vst [vmem:[%s190 + $0x70] sm:$0xff] %v537
          %619 = vst [vmem:[%s190 + $0x78] sm:$0xff] %v540
        $region62: #{tpu_custom_call.1} parent=27 // pred_fallthru
          _
        %s620 = sand.u32 %s97, 1
        %s621 = scalar_lea.sflag [#allocation6], %s620
        %s622 = sand.u32 %s97, 1
        %s623 = smul.addr %s622, 128
        %s624 = scalar_lea.vmem [#allocation7], %s623
        // Predicated region
        $region63: #{tpu_custom_call.1} parent=27 // pred_check
          %p625 = pneg %p107
        $region64: #{tpu_custom_call.1} parent=27 // pred_check_branch
          %627 = sbr.rel (%p625) target = $region66
        $region65: #{tpu_custom_call.1} parent=27 // pred_region
          %p628 = scmp.eq.s32.totalorder %s25, 2
          %s629 = scalar_select %p628, %s26, 0
          %s630 = smul.u32 16, %s629
          %s632 = ssub.s32 2048, 2048
          %633 = vsyncadd %s621, %s632
          %s634 = smul.addr %s630, 128
          %s635 = scalar_lea.hbm %s4, %s634
          %s636 = sshll.u32 %s624, 4
          %s637 = int_to_ptr.vmem [resolvable:$true] %s636
          %642 = dma.vmem_to_hbm [thread:$0]  %s637, 2048, %s635, %s621, 128, 128, 8
        $region66: #{tpu_custom_call.1} parent=27 // pred_fallthru
          _
      $region28: #{tpu_custom_call.1} parent=5 // pred_fallthru
        _
      %p643 = scmp.le.s32.totalorder 2, %s16
      // Predicated region
      $region67: #{tpu_custom_call.1} parent=5 // pred_check
        %p644 = pneg %p643
      $region68: #{tpu_custom_call.1} parent=5 // pred_check_branch
        %646 = sbr.rel (%p644) target = $region70
      $region69: #{tpu_custom_call.1} parent=5 // pred_region
        %s647 = ssub.s32 %s16, 2
        // Predicated region
        $region71: #{tpu_custom_call.1} parent=69 // pred_check
          %p648 = pneg %p113
        $region72: #{tpu_custom_call.1} parent=69 // pred_check_branch
          %650 = sbr.rel (%p648) target = $region74
        $region73: #{tpu_custom_call.1} parent=69 // pred_region
          %s651 = sand.u32 %s98, 1
          %s652 = scalar_lea.sflag [#allocation6], %s651
          %s653 = sand.u32 %s98, 1
          %s654 = smul.addr %s653, 128
          %s655 = scalar_lea.vmem [#allocation7], %s654
          %656 = dma.done %s652, 2048
        $region74: #{tpu_custom_call.1} parent=69 // pred_fallthru
          _
      $region70: #{tpu_custom_call.1} parent=5 // pred_fallthru
        _
    $region6: #{tpu_custom_call.1} parent=1 // loop_footer
      %s20 = sadd.s32 1, %s16
    $region7: #{tpu_custom_call.1} parent=1 // loop_footer_branch
      %15 = sbr.rel target = $region3
    $region8: #{tpu_custom_call.1} parent=1 // loop_exit
      _
    %657 = vsyncpa [#allocation5], 1
    %s658 = scalar_lea.sflag [#allocation5], 1
    %659 = vsyncpa %s658, 1
    %660 = vsyncpa [#allocation6], 1
    %s661 = scalar_lea.sflag [#allocation6], 1
    %662 = vsyncpa %s661, 1

</llo_original>
